<compile_context>
chip_gen: v6e
topology: v6e:2x2x1
jax: 0.10.0
libtpu: 0.0.40
codegen_flags: <defaults>
</compile_context>

<pallas_src>
import functools
import math

import jax
import jax.numpy as jnp
from jax import lax
from jax.experimental import pallas as pl
from jax.experimental.pallas import tpu as pltpu

_LANE = 128
_NEG_BIG = -1e30
_VMEM_LIMIT = 32 * 1024 * 1024  # conservative scoped-VMEM cap (ok on v5e/v6e/v7x)


def _round_up(x, m):
    return ((x + m - 1) // m) * m


def _pad2d(x, rows, cols):
    pr, pc = rows - x.shape[0], cols - x.shape[1]
    if pr or pc:
        x = jnp.pad(x, ((0, pr), (0, pc)))
    return x


def _sublane(dtype):
    return {4: 8, 2: 16, 1: 32}.get(jnp.dtype(dtype).itemsize, 8)


def _pick_lane_tile(total, cap=512):
    """Largest multiple of 128 (<= cap) dividing `total`; full dim when small."""
    if total <= cap:
        return total
    best = _LANE
    for t in range(2 * _LANE, cap + 1, _LANE):
        if total % t == 0:
            best = t
    return best


# ----------------------- fused K/V projection pass --------------------------

def _kv_proj_kernel(x_ref, w_ref, o_ref, acc_ref):
    @pl.when(pl.program_id(2) == 0)
    def _():
        acc_ref[...] = jnp.zeros_like(acc_ref)

    acc_ref[...] += jnp.dot(x_ref[...], w_ref[...],
                            preferred_element_type=jnp.float32)

    @pl.when(pl.program_id(2) == pl.num_programs(2) - 1)
    def _():
        o_ref[...] = acc_ref[...].astype(o_ref.dtype)


def _project(x, w_t, out_dtype):
    """x:(M,K) @ w_t:(K,N) -> (M,N).  M mult-of-8 (or <=512 full), K,N mult-of-128."""
    M, K = x.shape
    _, N = w_t.shape
    tm = M if M <= 512 else 512          # M is a multiple of 512 whenever > 512
    tn = _pick_lane_tile(N)              # 256/512-aligned MXU-friendly output tile
    tkc = _pick_lane_tile(K)             # contraction tile (full K when small)
    assert M % tm == 0 and N % tn == 0 and K % tkc == 0
    isz = jnp.dtype(out_dtype).itemsize
    cost = pl.CostEstimate(
        flops=int(2 * M * N * K), transcendentals=0,
        bytes_accessed=int(isz * (M * K + (M // tm) * K * N + M * N)))
    return pl.pallas_call(
        _kv_proj_kernel,
        out_shape=jax.ShapeDtypeStruct((M, N), out_dtype),
        grid_spec=pltpu.PrefetchScalarGridSpec(
            num_scalar_prefetch=0,
            grid=(M // tm, N // tn, K // tkc),
            in_specs=[pl.BlockSpec((tm, tkc), lambda i, j, k: (i, k)),
                      pl.BlockSpec((tkc, tn), lambda i, j, k: (k, j))],
            out_specs=pl.BlockSpec((tm, tn), lambda i, j, k: (i, j)),
            scratch_shapes=[pltpu.VMEM((tm, tn), jnp.float32)]),
        compiler_params=pltpu.CompilerParams(
            dimension_semantics=("parallel", "parallel", "arbitrary"),
            vmem_limit_bytes=_VMEM_LIMIT),
        cost_estimate=cost,
    )(x, w_t)


# ------------------- flash attention (with fused Q proj) --------------------

def _flash_kernel(xq_ref, wq_ref, kv_ref, o_ref,
                  q_sc, m_sc, l_sc, acc_sc, *,
                  scale, dk_p, nk_actual, nk_padded, tk):
    ki = pl.program_id(1)
    nsteps = pl.num_programs(1)

    @pl.when(ki == 0)
    def _init():
        # Project this q tile exactly once (fused Q projection), fold in the
        # static 1/sqrt(dim_k) scale, and reset the online-softmax state.
        q = jnp.dot(xq_ref[...], wq_ref[...], preferred_element_type=jnp.float32)
        q_sc[...] = (q * scale).astype(q_sc.dtype)
        m_sc[...] = jnp.full(m_sc.shape, _NEG_BIG, dtype=jnp.float32)
        l_sc[...] = jnp.zeros(l_sc.shape, dtype=jnp.float32)
        acc_sc[...] = jnp.zeros(acc_sc.shape, dtype=jnp.float32)

    k = kv_ref[:, :dk_p]                 # (TK, dk_p)  — lane-aligned static slice
    v = kv_ref[:, dk_p:]                 # (TK, dv_p)

    # scores = q @ k.T without an on-chip transpose: contract the last dims.
    s = lax.dot_general(q_sc[...], k, (((1,), (1,)), ((), ())),
                        preferred_element_type=jnp.float32)       # (TQ, TK)

    def update(scores):
        m_prev = m_sc[...]
        m_new = jnp.maximum(m_prev, jnp.max(scores, axis=-1, keepdims=True))
        alpha = jnp.exp(m_prev - m_new)
        p = jnp.exp(scores - m_new)
        l_sc[...] = alpha * l_sc[...] + jnp.sum(p, axis=-1, keepdims=True)
        acc_sc[...] = alpha * acc_sc[...] + jnp.dot(
            p.astype(v.dtype), v, preferred_element_type=jnp.float32)
        m_sc[...] = m_new

    if nk_actual < nk_padded:
        # Padded kv columns only live in the LAST kv tile — gate the mask so
        # the iota/compare/select VPU work is not paid on every step.
        is_last = ki == nsteps - 1

        @pl.when(jnp.logical_not(is_last))
        def _():
            update(s)

        @pl.when(is_last)
        def _():
            col = lax.broadcasted_iota(jnp.int32, s.shape, 1) + ki * tk
            update(jnp.where(col < nk_actual, s, _NEG_BIG))
    else:
        update(s)

    @pl.when(ki == nsteps - 1)
    def _finalize():
        denom = l_sc[...]
        inv = pl.reciprocal(denom, approx=True)      # EUP path (free slot)
        inv = inv * (2.0 - denom * inv)              # one Newton step -> ~full prec
        o_ref[...] = (acc_sc[...] * inv).astype(o_ref.dtype)


# --------------------------------- wrappers ----------------------------------

def prepare_weights(wq, wk, wv):
    """Pad + transpose weights to TPU (in, out) layout once (cacheable)."""
    dim_k, dim_q = wq.shape
    dim_v = wv.shape[0]
    dq_p = _round_up(dim_q, _LANE)
    dk_p = _round_up(dim_k, _LANE)
    dv_p = _round_up(dim_v, _LANE)
    wq_t = _pad2d(wq.T, dq_p, dk_p)
    # Fused K|V weight slab: one projection kernel produces both k and v.
    wkv_t = jnp.concatenate([_pad2d(wk.T, dq_p, dk_p),
                             _pad2d(wv.T, dq_p, dv_p)], axis=1)
    return dict(wq_t=wq_t, wkv_t=wkv_t,
                dim_q=dim_q, dim_k=dim_k, dim_v=dim_v,
                dq_p=dq_p, dk_p=dk_p, dv_p=dv_p)


def self_attention_prepared(xq, xkv, prep):
    nq, dim_q = xq.shape
    nk, dim_q2 = xkv.shape
    assert dim_q == prep["dim_q"] and dim_q2 == dim_q
    out_dtype = xq.dtype
    dq_p, dk_p, dv_p = prep["dq_p"], prep["dk_p"], prep["dv_p"]
    dim_v = prep["dim_v"]
    scale = 1.0 / math.sqrt(prep["dim_k"])
    sub = _sublane(out_dtype)

    # Larger tiles than before: tq up to 256, tk up to 512 (amortize per-step
    # overhead, fewer m/l/acc rescales, fewer K/V HBM re-reads).
    tq = _round_up(nq, sub) if nq <= 256 else 256
    tk = _round_up(nk, sub) if nk <= 512 else 512
    nq_p = _round_up(nq, tq)
    nk_p = _round_up(nk, tk)

    xq_p = _pad2d(xq, nq_p, dq_p)
    xkv_p = _pad2d(xkv, nk_p, dq_p)

    # Single fused K/V projection dispatch (xkv streamed from HBM once).
    kv = _project(xkv_p, prep["wkv_t"], out_dtype)       # (nk_p, dk_p + dv_p)

    isz = jnp.dtype(out_dtype).itemsize
    cost = pl.CostEstimate(
        flops=int(2 * nq_p * dq_p * dk_p + 2 * nq_p * nk_p * (dk_p + dv_p)),
        transcendentals=int(nq_p * nk_p),
        bytes_accessed=int(isz * (xq_p.size + prep["wq_t"].size
                                  + (nq_p // tq) * kv.size + nq_p * dv_p)))

    out_p = pl.pallas_call(
        functools.partial(_flash_kernel, scale=scale, dk_p=dk_p,
                          nk_actual=nk, nk_padded=nk_p, tk=tk),
        out_shape=jax.ShapeDtypeStruct((nq_p, dv_p), out_dtype),
        grid_spec=pltpu.PrefetchScalarGridSpec(
            num_scalar_prefetch=0,
            grid=(nq_p // tq, nk_p // tk),
            in_specs=[pl.BlockSpec((tq, dq_p), lambda qi, ki: (qi, 0)),       # xq
                      pl.BlockSpec((dq_p, dk_p), lambda qi, ki: (0, 0)),      # wq_t (resident)
                      pl.BlockSpec((tk, dk_p + dv_p), lambda qi, ki: (ki, 0))],  # k|v slab
            out_specs=pl.BlockSpec((tq, dv_p), lambda qi, ki: (qi, 0)),
            scratch_shapes=[pltpu.VMEM((tq, dk_p), jnp.float32),   # projected q
                            pltpu.VMEM((tq, 1), jnp.float32),      # m
                            pltpu.VMEM((tq, 1), jnp.float32),      # l
                            pltpu.VMEM((tq, dv_p), jnp.float32)],  # acc
        ),
        compiler_params=pltpu.CompilerParams(
            dimension_semantics=("parallel", "arbitrary"),
            vmem_limit_bytes=_VMEM_LIMIT),
        cost_estimate=cost,
    )(xq_p, prep["wq_t"], kv)

    return out_p[:nq, :dim_v]


def self_attention(xq, xkv, wq, wk, wv):
    """Pallas TPU implementation of SelfAttention.forward(xq, xkv).

    xq:(Nq,dim_q) xkv:(Nk,dim_q) wq,wk:(dim_k,dim_q) wv:(dim_v,dim_q)
    returns (Nq, dim_v).
    """
    return self_attention_prepared(xq, xkv, prepare_weights(wq, wk, wv))


# -------------------------------- reference ---------------------------------

def reference(xq, xkv, wq, wk, wv):
    qq = xq @ wq.T
    kk = xkv @ wk.T
    vv = xkv @ wv.T
    scores = (qq @ kk.T) * (1.0 / math.sqrt(wq.shape[0]))
    return jax.nn.softmax(scores, axis=-1) @ vv


if __name__ == "__main__":
    key = jax.random.PRNGKey(0)

    def make_case(key, nq, nk, dim_q, dim_k, dim_v):
        k_xq, k_xkv, k_wq, k_wk, k_wv = jax.random.split(key, 5)
        bound = 1.0 / math.sqrt(dim_q)
        xq = jax.random.normal(k_xq, (nq, dim_q), dtype=jnp.float32)
        xkv = jax.random.normal(k_xkv, (nk, dim_q), dtype=jnp.float32)
        wq = jax.random.uniform(k_wq, (dim_k, dim_q), jnp.float32, -bound, bound)
        wk = jax.random.uniform(k_wk, (dim_k, dim_q), jnp.float32, -bound, bound)
        wv = jax.random.uniform(k_wv, (dim_v, dim_q), jnp.float32, -bound, bound)
        return xq, xkv, wq, wk, wv

    key1, key2, key3 = jax.random.split(key, 3)
    # Small shape matching the module spec (single-tile path).
    case_small = make_case(key1, nq=8, nk=8, dim_q=32, dim_k=16, dim_v=24)
    # Ragged single-kv-tile shape exercising padding + last-tile kv masking.
    case_big = make_case(key2, nq=200, nk=300, dim_q=96, dim_k=80, dim_v=72)
    # Multi-tile shape exercising the (q, kv) grid, online softmax across kv
    # tiles, megacore-splittable q axis and masking on the final kv tile.
    case_multi = make_case(key3, nq=520, nk=1200, dim_q=160, dim_k=96, dim_v=104)

    for name, case in (("small", case_small), ("big", case_big),
                       ("multi", case_multi)):
        out = jax.block_until_ready(self_attention(*case))
        ref = reference(*case)
        assert out.shape == ref.shape, (name, out.shape, ref.shape)
        err = float(jnp.max(jnp.abs(out - ref)))
        assert jnp.allclose(out, ref, atol=5e-4, rtol=5e-4), (
            f"{name}: max abs err = {err}")

    print("KERNEL_OK")
</pallas_src>

<mosaic_0001>
module attributes {stable_mosaic.version = 11 : i64} {
  func.func @_kv_proj_kernel(%arg0: i32, %arg1: i32, %arg2: i32, %arg3: memref<8x128xf32, #tpu.memory_space<vmem>>, %arg4: memref<128x256xf32, #tpu.memory_space<vmem>>, %arg5: memref<8x256xf32, #tpu.memory_space<vmem>>, %arg6: memref<8x256xf32, #tpu.memory_space<vmem>>) attributes {dimension_semantics = [#tpu.dimension_semantics<parallel>, #tpu.dimension_semantics<parallel>, #tpu.dimension_semantics<arbitrary>], iteration_bounds = array<i64: 1, 1, 1>, scalar_prefetch = 0 : i64, scratch_operands = 1 : i64, tpu.core_type = #tpu.core_type<tc>, window_params = [{transform_indices = @transform_0, window_bounds = array<i64: 8, 128>}, {transform_indices = @transform_1, window_bounds = array<i64: 128, 256>}, {transform_indices = @transform_2, window_bounds = array<i64: 8, 256>}]} {
    %c0_i32 = arith.constant 0 : i32
    %0 = arith.cmpi eq, %arg2, %c0_i32 : i32
    %1 = arith.extui %0 : i1 to i32
    %c0_i32_0 = arith.constant 0 : i32
    %2 = arith.cmpi ne, %1, %c0_i32_0 : i32
    scf.if %2 {
      %cst_10 = arith.constant 0.000000e+00 : f32
      %12 = vector.broadcast %cst_10 : f32 to vector<8x256xf32>
      %c0_11 = arith.constant 0 : index
      %c0_12 = arith.constant 0 : index
      %13 = vector.load %arg6[%c0_11, %c0_12] : memref<8x256xf32, #tpu.memory_space<vmem>>, vector<8x256xf32>
      tpu.vector_store %arg6[%c0_11, %c0_12], %12 {strides = array<i32>} : memref<8x256xf32, #tpu.memory_space<vmem>>, vector<8x256xf32>,
    } else {
    }
    %c0 = arith.constant 0 : index
    %c0_1 = arith.constant 0 : index
    %3 = vector.load %arg6[%c0, %c0_1] : memref<8x256xf32, #tpu.memory_space<vmem>>, vector<8x256xf32>
    %c0_2 = arith.constant 0 : index
    %c0_3 = arith.constant 0 : index
    %4 = vector.load %arg3[%c0_2, %c0_3] : memref<8x128xf32, #tpu.memory_space<vmem>>, vector<8x128xf32>
    %c0_4 = arith.constant 0 : index
    %c0_5 = arith.constant 0 : index
    %5 = vector.load %arg4[%c0_4, %c0_5] : memref<128x256xf32, #tpu.memory_space<vmem>>, vector<128x256xf32>
    %cst = arith.constant dense<0.000000e+00> : vector<8x256xf32>
    %6 = tpu.matmul %4, %5, %cst {dimension_numbers = #tpu.dot_dimension_numbers<[1], [0], [0], [1], [0, 0, 1, 1], [], []>} : vector<8x128xf32>, vector<128x256xf32>, vector<8x256xf32> -> vector<8x256xf32>
    %7 = arith.addf %3, %6 : vector<8x256xf32>
    %c0_6 = arith.constant 0 : index
    %c0_7 = arith.constant 0 : index
    %8 = vector.load %arg6[%c0_6, %c0_7] : memref<8x256xf32, #tpu.memory_space<vmem>>, vector<8x256xf32>
    tpu.vector_store %arg6[%c0_6, %c0_7], %7 {strides = array<i32>} : memref<8x256xf32, #tpu.memory_space<vmem>>, vector<8x256xf32>,
    %c0_i32_8 = arith.constant 0 : i32
    %9 = arith.cmpi eq, %arg2, %c0_i32_8 : i32
    %10 = arith.extui %9 : i1 to i32
    %c0_i32_9 = arith.constant 0 : i32
    %11 = arith.cmpi ne, %10, %c0_i32_9 : i32
    scf.if %11 {
      %c0_10 = arith.constant 0 : index
      %c0_11 = arith.constant 0 : index
      %12 = vector.load %arg6[%c0_10, %c0_11] : memref<8x256xf32, #tpu.memory_space<vmem>>, vector<8x256xf32>
      %c0_12 = arith.constant 0 : index
      %c0_13 = arith.constant 0 : index
      %13 = vector.load %arg5[%c0_12, %c0_13] : memref<8x256xf32, #tpu.memory_space<vmem>>, vector<8x256xf32>
      tpu.vector_store %arg5[%c0_12, %c0_13], %12 {strides = array<i32>} : memref<8x256xf32, #tpu.memory_space<vmem>>, vector<8x256xf32>,
    } else {
    }
    return
  }
  func.func @transform_0(%arg0: i32, %arg1: i32, %arg2: i32) -> (i32, i32) {
    %c0_i32 = arith.constant 0 : i32
    return %arg0, %arg2 : i32, i32
  }
  func.func @transform_1(%arg0: i32, %arg1: i32, %arg2: i32) -> (i32, i32) {
    %c0_i32 = arith.constant 0 : i32
    return %arg2, %arg1 : i32, i32
  }
  func.func @transform_2(%arg0: i32, %arg1: i32, %arg2: i32) -> (i32, i32) {
    %c0_i32 = arith.constant 0 : i32
    return %arg0, %arg1 : i32, i32
  }
}

</mosaic_0001>

<llo_original>
// kernel: tpu_custom_call.1
$region0: #{tpu_custom_call.1}
  #allocation0 [shape = 'u32[]', space=smem, size = 0x4, offset = 0x4, fixed_abs, tag = 'smem constant byte address 0x4 - core index']
  #allocation1 [shape = 'u32[144,128]{1,0:T(1,128)}', space=vmem, size = 0x12000, scoped, tag = 'internal scratch']
  #allocation2 [shape = 'f32[8,256]{1,0:T(8,128)}', space=vmem, size = 0x2000, scoped, tag = 'scratch operand']
  %s0 = inlined_call_operand.hbm [shape: f32[8,128], index: 0, kind: input, shape index: {}]
  %s1 = inlined_call_operand.hbm [shape: f32[128,256], index: 1, kind: input, shape index: {}]
  %s2 = inlined_call_operand.hbm [shape: f32[8,256], index: 2, kind: output, shape index: {}]
  %s3 = sld [smem:[#allocation0]]
  $region34: #{tpu_custom_call.1} parent=0
    _
  %s5 = ssub.s32 1, %s3
  %s6 = scalar_select 0, %s5, %s3
  $region1: #{tpu_custom_call.1} parent=0
    #allocation3 [shape = 'u8[4096]{0}', space=vmem, size = 0x1000, scoped, tag = 'input window, operand 0, single buffered']
    #allocation4 [shape = 's32[1]{0}', space=sflag, size = 0x4, scoped, tag = 'scoped memory for tpu_custom_call.1']
    #allocation5 [shape = 's32[1]{0}', space=sflag, size = 0x4, scoped, tag = 'scoped memory for tpu_custom_call.1']
    #allocation6 [shape = 'u8[131072]{0}', space=vmem, size = 0x20000, scoped, tag = 'input window, operand 1, single buffered']
    #allocation7 [shape = 's32[1]{0}', space=sflag, size = 0x4, scoped, tag = 'scoped memory for tpu_custom_call.1']
    #allocation8 [shape = 'u8[8192]{0}', space=vmem, size = 0x2000, scoped, tag = 'output window, operand 0, single buffered']
    %7 = vsyncpa [#allocation4], 0
    %8 = vsyncpa [#allocation7], 0
    %9 = vsyncpa [#allocation5], 0
    // Predicated region
    $region2: #{tpu_custom_call.1} parent=1 // pred_check
      _
    $region3: #{tpu_custom_call.1} parent=1 // pred_check_branch
      %11 = sbr.rel (0) target = $region5
    $region4: #{tpu_custom_call.1} parent=1 // pred_region
      %s13 = ssub.s32 128, 128
      %14 = vsyncadd [#allocation4], %s13
      %s16 = sshll.u32 [#allocation3], 4
      %s17 = int_to_ptr.vmem [resolvable:$true] %s16
      %19 = dma.hbm_to_vmem [thread:$0]  %s0, 128, %s17, [#allocation4]
    $region5: #{tpu_custom_call.1} parent=1 // pred_fallthru
      _
    // Predicated region
    $region6: #{tpu_custom_call.1} parent=1 // pred_check
      _
    $region7: #{tpu_custom_call.1} parent=1 // pred_check_branch
      %21 = sbr.rel (0) target = $region9
    $region8: #{tpu_custom_call.1} parent=1 // pred_region
      %s23 = ssub.s32 4096, 4096
      %24 = vsyncadd [#allocation7], %s23
      %s25 = sshll.u32 [#allocation6], 4
      %s26 = int_to_ptr.vmem [resolvable:$true] %s25
      %31 = dma.hbm_to_vmem [thread:$0]  %s1, 4096, %s26, [#allocation7], 256, 256, 16
    $region9: #{tpu_custom_call.1} parent=1 // pred_fallthru
      _
    // Predicated region
    $region10: #{tpu_custom_call.1} parent=1 // pred_check
      _
    $region11: #{tpu_custom_call.1} parent=1 // pred_check_branch
      %33 = sbr.rel (0) target = $region13
    $region12: #{tpu_custom_call.1} parent=1 // pred_region
      %34 = dma.done [#allocation4], 128
    $region13: #{tpu_custom_call.1} parent=1 // pred_fallthru
      _
    // Predicated region
    $region14: #{tpu_custom_call.1} parent=1 // pred_check
      _
    $region15: #{tpu_custom_call.1} parent=1 // pred_check_branch
      %36 = sbr.rel (0) target = $region17
    $region16: #{tpu_custom_call.1} parent=1 // pred_region
      %37 = dma.done [#allocation7], 4096
    $region17: #{tpu_custom_call.1} parent=1 // pred_fallthru
      _
    %p38 = scmp.eq.s32.totalorder 0, 0
    // Predicated region
    $region18: #{tpu_custom_call.1} parent=1 // pred_check
      %p39 = pneg %p38
    $region19: #{tpu_custom_call.1} parent=1 // pred_check_branch
      %41 = sbr.rel (%p39) target = $region21
    $region20: #{tpu_custom_call.1} parent=1 // pred_region
      %42 = vst [vmem:[#allocation2] sm:$0xff] 0.0
      %43 = vst [vmem:[#allocation2 + $0x8] sm:$0xff] 0.0
    $region21: #{tpu_custom_call.1} parent=1 // pred_fallthru
      _
    %v44 = vld [vmem:[#allocation2] sm:$0xff]
    %v45 = vld [vmem:[#allocation2 + $0x8] sm:$0xff]
    %v46 = vld [vmem:[#allocation3] sm:$0xff]
    %v47 = vld [vmem:[#allocation6] sm:$0xff]
    %v48 = vld [vmem:[#allocation6 + $0x8] sm:$0xff]
    %v49 = vld [vmem:[#allocation6 + $0x10] sm:$0xff]
    %v50 = vld [vmem:[#allocation6 + $0x18] sm:$0xff]
    %v51 = vld [vmem:[#allocation6 + $0x20] sm:$0xff]
    %v52 = vld [vmem:[#allocation6 + $0x28] sm:$0xff]
    %v53 = vld [vmem:[#allocation6 + $0x30] sm:$0xff]
    %v54 = vld [vmem:[#allocation6 + $0x38] sm:$0xff]
    %v55 = vld [vmem:[#allocation6 + $0x40] sm:$0xff]
    %v56 = vld [vmem:[#allocation6 + $0x48] sm:$0xff]
    %v57 = vld [vmem:[#allocation6 + $0x50] sm:$0xff]
    %v58 = vld [vmem:[#allocation6 + $0x58] sm:$0xff]
    %v59 = vld [vmem:[#allocation6 + $0x60] sm:$0xff]
    %v60 = vld [vmem:[#allocation6 + $0x68] sm:$0xff]
    %v61 = vld [vmem:[#allocation6 + $0x70] sm:$0xff]
    %v62 = vld [vmem:[#allocation6 + $0x78] sm:$0xff]
    %v63 = vld [vmem:[#allocation6 + $0x80] sm:$0xff]
    %v64 = vld [vmem:[#allocation6 + $0x88] sm:$0xff]
    %v65 = vld [vmem:[#allocation6 + $0x90] sm:$0xff]
    %v66 = vld [vmem:[#allocation6 + $0x98] sm:$0xff]
    %v67 = vld [vmem:[#allocation6 + $0xa0] sm:$0xff]
    %v68 = vld [vmem:[#allocation6 + $0xa8] sm:$0xff]
    %v69 = vld [vmem:[#allocation6 + $0xb0] sm:$0xff]
    %v70 = vld [vmem:[#allocation6 + $0xb8] sm:$0xff]
    %v71 = vld [vmem:[#allocation6 + $0xc0] sm:$0xff]
    %v72 = vld [vmem:[#allocation6 + $0xc8] sm:$0xff]
    %v73 = vld [vmem:[#allocation6 + $0xd0] sm:$0xff]
    %v74 = vld [vmem:[#allocation6 + $0xd8] sm:$0xff]
    %v75 = vld [vmem:[#allocation6 + $0xe0] sm:$0xff]
    %v76 = vld [vmem:[#allocation6 + $0xe8] sm:$0xff]
    %v77 = vld [vmem:[#allocation6 + $0xf0] sm:$0xff]
    %v78 = vld [vmem:[#allocation6 + $0xf8] sm:$0xff]
    %79 = vmatprep.subr.mxu0 %v78
    %80 = vmatpush1.msra.mxu0 %v77
    %81 = vmatprep.subr.mxu0 %v76
    %82 = vmatpush1.msra.mxu0 %v75
    %83 = vmatprep.subr.mxu0 %v74
    %84 = vmatpush1.msra.mxu0 %v73
    %85 = vmatprep.subr.mxu0 %v72
    %86 = vmatpush1.msra.mxu0 %v71
    %87 = vmatprep.subr.mxu0 %v70
    %88 = vmatpush1.msra.mxu0 %v69
    %89 = vmatprep.subr.mxu0 %v68
    %90 = vmatpush1.msra.mxu0 %v67
    %91 = vmatprep.subr.mxu0 %v66
    %92 = vmatpush1.msra.mxu0 %v65
    %93 = vmatprep.subr.mxu0 %v64
    %94 = vmatpush1.msra.mxu0 %v63
    %95 = vmatprep.subr.mxu0 %v62
    %96 = vmatpush1.msra.mxu0 %v61
    %97 = vmatprep.subr.mxu0 %v60
    %98 = vmatpush1.msra.mxu0 %v59
    %99 = vmatprep.subr.mxu0 %v58
    %100 = vmatpush1.msra.mxu0 %v57
    %101 = vmatprep.subr.mxu0 %v56
    %102 = vmatpush1.msra.mxu0 %v55
    %103 = vmatprep.subr.mxu0 %v54
    %104 = vmatpush1.msra.mxu0 %v53
    %105 = vmatprep.subr.mxu0 %v52
    %106 = vmatpush1.msra.mxu0 %v51
    %107 = vmatprep.subr.mxu0 %v50
    %108 = vmatpush1.msra.mxu0 %v49
    %109 = vmatprep.subr.mxu0 %v48
    %110 = vmatpush1.msra.mxu0 %v47
    %111 = vmatprep.subr.mxu0 0.0
    %112 = vmatpush2.msra.mxu0 0.0
    %113 = vmatprep.subr.mxu0 0.0
    %114 = vmatpush2.msra.mxu0 0.0
    %115 = vmatprep.subr.mxu0 0.0
    %116 = vmatpush2.msra.mxu0 0.0
    %117 = vmatprep.subr.mxu0 0.0
    %118 = vmatpush2.msra.mxu0 0.0
    %119 = vmatprep.subr.mxu0 0.0
    %120 = vmatpush2.msra.mxu0 0.0
    %121 = vmatprep.subr.mxu0 0.0
    %122 = vmatpush2.msra.mxu0 0.0
    %123 = vmatprep.subr.mxu0 0.0
    %124 = vmatpush2.msra.mxu0 0.0
    %125 = vmatprep.subr.mxu0 0.0
    %126 = vmatpush2.msra.mxu0 0.0
    %127 = vmatprep.subr.mxu0 0.0
    %128 = vmatpush2.msra.mxu0 0.0
    %129 = vmatprep.subr.mxu0 0.0
    %130 = vmatpush2.msra.mxu0 0.0
    %131 = vmatprep.subr.mxu0 0.0
    %132 = vmatpush2.msra.mxu0 0.0
    %133 = vmatprep.subr.mxu0 0.0
    %134 = vmatpush2.msra.mxu0 0.0
    %135 = vmatprep.subr.mxu0 0.0
    %136 = vmatpush2.msra.mxu0 0.0
    %137 = vmatprep.subr.mxu0 0.0
    %138 = vmatpush2.msra.mxu0 0.0
    %139 = vmatprep.subr.mxu0 0.0
    %140 = vmatpush2.msra.mxu0 0.0
    %141 = vmatprep.subr.mxu0 0.0
    %142 = vmatpush2.msra.mxu0 0.0
    %143 = vmatprep.mubr.f32.mxu0 0.0
    %144 = vmatmul.mubr.f32.gmra.mxu0 %v46
    %v145 = vpop.f32.mrf.mxu0
    %v146 = vadd.f32 0.0, %v145
    %v147 = vpop.f32.mrf.mxu0
    %v148 = vadd.f32 0.0, %v147
    %149 = vdwg.mxu0
    %v150 = vadd.f32 %v44, %v146
    %v151 = vadd.f32 %v45, %v148
    %152 = vst [vmem:[#allocation2] sm:$0xff] %v150
    %153 = vst [vmem:[#allocation2 + $0x8] sm:$0xff] %v151
    // Predicated region
    $region22: #{tpu_custom_call.1} parent=1 // pred_check
      %p154 = pneg %p38
    $region23: #{tpu_custom_call.1} parent=1 // pred_check_branch
      %156 = sbr.rel (%p154) target = $region25
    $region24: #{tpu_custom_call.1} parent=1 // pred_region
      %v157 = vld [vmem:[#allocation2] sm:$0xff]
      %v158 = vld [vmem:[#allocation2 + $0x8] sm:$0xff]
      %159 = vst [vmem:[#allocation8] sm:$0xff] %v157
      %160 = vst [vmem:[#allocation8 + $0x8] sm:$0xff] %v158
    $region25: #{tpu_custom_call.1} parent=1 // pred_fallthru
      _
    // Predicated region
    $region26: #{tpu_custom_call.1} parent=1 // pred_check
      _
    $region27: #{tpu_custom_call.1} parent=1 // pred_check_branch
      %162 = sbr.rel (0) target = $region29
    $region28: #{tpu_custom_call.1} parent=1 // pred_region
      %s164 = ssub.s32 256, 256
      %165 = vsyncadd [#allocation5], %s164
      %s167 = sshll.u32 [#allocation8], 4
      %s168 = int_to_ptr.vmem [resolvable:$true] %s167
      %170 = dma.vmem_to_hbm [thread:$0]  %s168, 256, %s2, [#allocation5]
    $region29: #{tpu_custom_call.1} parent=1 // pred_fallthru
      _
    // Predicated region
    $region30: #{tpu_custom_call.1} parent=1 // pred_check
      _
    $region31: #{tpu_custom_call.1} parent=1 // pred_check_branch
      %172 = sbr.rel (0) target = $region33
    $region32: #{tpu_custom_call.1} parent=1 // pred_region
      %173 = dma.done [#allocation5], 256
    $region33: #{tpu_custom_call.1} parent=1 // pred_fallthru
      _
    %174 = vsyncpa [#allocation4], 1
    %175 = vsyncpa [#allocation7], 1
    %176 = vsyncpa [#allocation5], 1

</llo_original>
